<compile_context>
chip_gen: v5e
topology: v5e:2x2
jax: 0.10.0
libtpu: 0.0.40
codegen_flags: <defaults>
</compile_context>

<pallas_src>
import functools

import jax
import jax.numpy as jnp
from jax.experimental import pallas as pl
from jax.experimental.pallas import tpu as pltpu

IN_FEATURES = 2
HIDDEN = 16
OUT_FEATURES = 4

CHUNK_ROWS = 64              # in-kernel chunk: (64, 128) f32 slab = 8 vregs
DEFAULT_ROWS_PER_TILE = 512  # up to 64K batch elements per grid step
MIN_KERNEL_BATCH = 8192      # re-benchmarked crossover vs. fused XLA fallback


def _round_up(n, m):
    return ((n + m - 1) // m) * m


def _cdiv(a, b):
    return -(-a // b)


def _pick_rows_per_tile(n_rows, requested=None):
    """Choose the per-grid-step row count S (rows of 128 batch elements).

    Invariants needed by the kernel / BlockSpec:
      * if S < n_rows_padded: S is a multiple of 8 (sublane rule);
      * if S > CHUNK_ROWS:    S is a multiple of CHUNK_ROWS (chunk loop).
    """
    if requested is None:
        if n_rows <= CHUNK_ROWS:
            return n_rows
        # Aim for >= 2 parallel grid steps (v7x megacore) but cap block size.
        s = _round_up(_cdiv(n_rows, 2), CHUNK_ROWS)
        return min(s, DEFAULT_ROWS_PER_TILE)
    s = max(1, int(requested))
    if s >= n_rows:
        return n_rows if n_rows <= CHUNK_ROWS else _round_up(n_rows, CHUNK_ROWS)
    if s > CHUNK_ROWS:
        return _round_up(s, CHUNK_ROWS)
    return _round_up(s, 8)


def _mlp_kernel(w1_ref, b1_ref, w2_ref, b2_ref, x_ref, o_ref):
    """Fused fc1 -> relu -> fc2 on dense (chunk, 128) batch slabs.

    x_ref : (IN_FEATURES,  S, 128)  VMEM
    o_ref : (OUT_FEATURES, S, 128)  VMEM
    w1_ref: (IN_FEATURES*HIDDEN,)   SMEM, row-major (in, hidden)
    b1_ref: (HIDDEN,)               SMEM
    w2_ref: (HIDDEN*OUT_FEATURES,)  SMEM, row-major (hidden, out)
    b2_ref: (OUT_FEATURES,)         SMEM
    """
    S = x_ref.shape[1]
    chunk = min(CHUNK_ROWS, S)          # static; wrapper guarantees S % chunk == 0
    n_chunks = S // chunk

    # Hoist all 116 SMEM scalar reads out of the chunk loop.
    w1 = [[w1_ref[f * HIDDEN + j] for j in range(HIDDEN)]
          for f in range(IN_FEATURES)]
    b1 = [b1_ref[j] for j in range(HIDDEN)]
    w2 = [[w2_ref[j * OUT_FEATURES + i] for i in range(OUT_FEATURES)]
          for j in range(HIDDEN)]
    b2 = [b2_ref[i] for i in range(OUT_FEATURES)]

    def chunk_body(c, carry):
        r = pl.multiple_of(c * chunk, chunk)
        x0 = x_ref[0, pl.ds(r, chunk), :]          # (chunk, 128) dense slab
        x1 = x_ref[1, pl.ds(r, chunk), :]          # (chunk, 128) dense slab

        # j = 0: fold b2 into the accumulator init (saves zeros + bias adds).
        h = jnp.maximum(w1[0][0] * x0 + w1[1][0] * x1 + b1[0], 0.0)
        acc = [w2[0][i] * h + b2[i] for i in range(OUT_FEATURES)]

        # Remaining hidden units: compute once, scatter to all 4 outputs.
        for j in range(1, HIDDEN):
            h = jnp.maximum(w1[0][j] * x0 + w1[1][j] * x1 + b1[j], 0.0)
            for i in range(OUT_FEATURES):
                acc[i] = acc[i] + w2[j][i] * h

        for i in range(OUT_FEATURES):
            o_ref[i, pl.ds(r, chunk), :] = acc[i]  # full-vreg unmasked stores
        return carry

    jax.lax.fori_loop(0, n_chunks, chunk_body, 0)


@functools.partial(jax.jit, static_argnames=("rows_per_tile",))
def dot_controller_forward_pallas(x, w1, b1, w2, b2, *, rows_per_tile=None):
    """x: (B, 2) f32 -> (B, 4) f32 through the Pallas kernel."""
    B = x.shape[0]
    n_rows = _round_up(B, 128) // 128
    S = _pick_rows_per_tile(n_rows, rows_per_tile)
    n_rows_p = _round_up(n_rows, S)
    Bp = n_rows_p * 128
    grid = n_rows_p // S

    # Pad batch, transpose so batch maps to (sublane, lane); reshape is free.
    x_p = jnp.pad(x.astype(jnp.float32), ((0, Bp - B), (0, 0)))   # (Bp, 2)
    xT = x_p.T.reshape(IN_FEATURES, n_rows_p, 128)

    w1f = w1.reshape(-1).astype(jnp.float32)   # (2*16,)
    b1f = b1.reshape(-1).astype(jnp.float32)   # (16,)
    w2f = w2.reshape(-1).astype(jnp.float32)   # (16*4,)
    b2f = b2.reshape(-1).astype(jnp.float32)   # (4,)

    smem_spec = pl.BlockSpec(memory_space=pltpu.MemorySpace.SMEM)

    oT = pl.pallas_call(
        _mlp_kernel,
        out_shape=jax.ShapeDtypeStruct((OUT_FEATURES, n_rows_p, 128),
                                       jnp.float32),
        grid=(grid,),
        in_specs=[
            smem_spec,  # w1 (flattened)
            smem_spec,  # b1
            smem_spec,  # w2 (flattened)
            smem_spec,  # b2
            pl.BlockSpec((IN_FEATURES, S, 128), lambda i: (0, i, 0)),
        ],
        out_specs=pl.BlockSpec((OUT_FEATURES, S, 128), lambda i: (0, i, 0)),
        compiler_params=pltpu.CompilerParams(
            dimension_semantics=("parallel",),
        ),
    )(w1f, b1f, w2f, b2f, xT)

    return oT.reshape(OUT_FEATURES, Bp)[:, :B].T   # (B, 4)


def dot_controller_forward(x, w1, b1, w2, b2, *,
                           min_kernel_batch=MIN_KERNEL_BATCH):
    """Dispatch: tiny batches use plain fused XLA (kernel launch + relayout
    overhead dominates there); larger batches stream through Pallas."""
    if x.shape[0] < min_kernel_batch:
        return jnp.maximum(x @ w1 + b1[None, :], 0.0) @ w2 + b2[None, :]
    return dot_controller_forward_pallas(x, w1, b1, w2, b2)


def init_params(key):
    """Deterministic init mirroring PyTorch nn.Linear default:
    U(-1/sqrt(fan_in), 1/sqrt(fan_in)). Weights stored as (in, out)."""
    k1, k2, k3, k4 = jax.random.split(key, 4)
    bound1 = 1.0 / jnp.sqrt(2.0)    # fc1 fan_in = 2
    bound2 = 1.0 / jnp.sqrt(16.0)   # fc2 fan_in = 16
    w1 = jax.random.uniform(k1, (IN_FEATURES, HIDDEN), jnp.float32, -bound1, bound1)
    b1 = jax.random.uniform(k2, (HIDDEN,), jnp.float32, -bound1, bound1)
    w2 = jax.random.uniform(k3, (HIDDEN, OUT_FEATURES), jnp.float32, -bound2, bound2)
    b2 = jax.random.uniform(k4, (OUT_FEATURES,), jnp.float32, -bound2, bound2)
    return w1, b1, w2, b2


if __name__ == "__main__":
    key = jax.random.PRNGKey(0)
    kp, kx = jax.random.split(key)
    w1, b1, w2, b2 = init_params(kp)

    def ref_fn(x):
        return jnp.maximum(x @ w1 + b1[None, :], 0.0) @ w2 + b2[None, :]

    # (1) Small ragged batch, auto tile: grid=1, single (3, 128) chunk.
    x_small = jax.random.normal(kx, (300, IN_FEATURES), jnp.float32)
    out = jax.block_until_ready(
        dot_controller_forward_pallas(x_small, w1, b1, w2, b2))
    assert out.shape == (300, OUT_FEATURES)
    assert jnp.allclose(out, ref_fn(x_small), atol=1e-5, rtol=1e-5)

    # (2) Multi-step "parallel" grid (grid=3) with 8-sublane tiles + padding.
    x_med = jax.random.normal(jax.random.fold_in(kx, 1),
                              (2100, IN_FEATURES), jnp.float32)
    out = jax.block_until_ready(
        dot_controller_forward_pallas(x_med, w1, b1, w2, b2, rows_per_tile=8))
    assert jnp.allclose(out, ref_fn(x_med), atol=1e-5, rtol=1e-5)

    # (3) Exercise the in-kernel chunk loop: S=128 rows -> 2 chunks of 64.
    x_big = jax.random.normal(jax.random.fold_in(kx, 2),
                              (8325, IN_FEATURES), jnp.float32)
    out = jax.block_until_ready(
        dot_controller_forward_pallas(x_big, w1, b1, w2, b2, rows_per_tile=128))
    assert jnp.allclose(out, ref_fn(x_big), atol=1e-5, rtol=1e-5)

    # (4) Tiny-batch dispatch falls back to plain fused XLA and agrees.
    small = dot_controller_forward(x_small[:8], w1, b1, w2, b2)
    assert jnp.allclose(small, ref_fn(x_small[:8]), atol=1e-5, rtol=1e-5)

    print("KERNEL_OK")
</pallas_src>

<mosaic_0001>
module attributes {stable_mosaic.version = 11 : i64} {
  func.func @_mlp_kernel(%arg0: i32, %arg1: memref<32xf32, #tpu.memory_space<smem>>, %arg2: memref<16xf32, #tpu.memory_space<smem>>, %arg3: memref<64xf32, #tpu.memory_space<smem>>, %arg4: memref<4xf32, #tpu.memory_space<smem>>, %arg5: memref<2x3x128xf32, #tpu.memory_space<vmem>>, %arg6: memref<4x3x128xf32, #tpu.memory_space<vmem>>) attributes {dimension_semantics = [#tpu.dimension_semantics<parallel>], iteration_bounds = array<i64: 1>, scalar_prefetch = 0 : i64, scratch_operands = 0 : i64, tpu.core_type = #tpu.core_type<tc>, window_params = [{transform_indices = @transform_0, window_bounds = array<i64: 32>}, {transform_indices = @transform_1, window_bounds = array<i64: 16>}, {transform_indices = @transform_2, window_bounds = array<i64: 64>}, {transform_indices = @transform_3, window_bounds = array<i64: 4>}, {transform_indices = @transform_4, window_bounds = array<i64: 2, 3, 128>}, {transform_indices = @transform_5, window_bounds = array<i64: 4, 3, 128>}]} {
    %c0 = arith.constant 0 : index
    %0 = memref.load %arg1[%c0] : memref<32xf32, #tpu.memory_space<smem>>
    %c1 = arith.constant 1 : index
    %1 = memref.load %arg1[%c1] : memref<32xf32, #tpu.memory_space<smem>>
    %c2 = arith.constant 2 : index
    %2 = memref.load %arg1[%c2] : memref<32xf32, #tpu.memory_space<smem>>
    %c3 = arith.constant 3 : index
    %3 = memref.load %arg1[%c3] : memref<32xf32, #tpu.memory_space<smem>>
    %c4 = arith.constant 4 : index
    %4 = memref.load %arg1[%c4] : memref<32xf32, #tpu.memory_space<smem>>
    %c5 = arith.constant 5 : index
    %5 = memref.load %arg1[%c5] : memref<32xf32, #tpu.memory_space<smem>>
    %c6 = arith.constant 6 : index
    %6 = memref.load %arg1[%c6] : memref<32xf32, #tpu.memory_space<smem>>
    %c7 = arith.constant 7 : index
    %7 = memref.load %arg1[%c7] : memref<32xf32, #tpu.memory_space<smem>>
    %c8 = arith.constant 8 : index
    %8 = memref.load %arg1[%c8] : memref<32xf32, #tpu.memory_space<smem>>
    %c9 = arith.constant 9 : index
    %9 = memref.load %arg1[%c9] : memref<32xf32, #tpu.memory_space<smem>>
    %c10 = arith.constant 10 : index
    %10 = memref.load %arg1[%c10] : memref<32xf32, #tpu.memory_space<smem>>
    %c11 = arith.constant 11 : index
    %11 = memref.load %arg1[%c11] : memref<32xf32, #tpu.memory_space<smem>>
    %c12 = arith.constant 12 : index
    %12 = memref.load %arg1[%c12] : memref<32xf32, #tpu.memory_space<smem>>
    %c13 = arith.constant 13 : index
    %13 = memref.load %arg1[%c13] : memref<32xf32, #tpu.memory_space<smem>>
    %c14 = arith.constant 14 : index
    %14 = memref.load %arg1[%c14] : memref<32xf32, #tpu.memory_space<smem>>
    %c15 = arith.constant 15 : index
    %15 = memref.load %arg1[%c15] : memref<32xf32, #tpu.memory_space<smem>>
    %c16 = arith.constant 16 : index
    %16 = memref.load %arg1[%c16] : memref<32xf32, #tpu.memory_space<smem>>
    %c17 = arith.constant 17 : index
    %17 = memref.load %arg1[%c17] : memref<32xf32, #tpu.memory_space<smem>>
    %c18 = arith.constant 18 : index
    %18 = memref.load %arg1[%c18] : memref<32xf32, #tpu.memory_space<smem>>
    %c19 = arith.constant 19 : index
    %19 = memref.load %arg1[%c19] : memref<32xf32, #tpu.memory_space<smem>>
    %c20 = arith.constant 20 : index
    %20 = memref.load %arg1[%c20] : memref<32xf32, #tpu.memory_space<smem>>
    %c21 = arith.constant 21 : index
    %21 = memref.load %arg1[%c21] : memref<32xf32, #tpu.memory_space<smem>>
    %c22 = arith.constant 22 : index
    %22 = memref.load %arg1[%c22] : memref<32xf32, #tpu.memory_space<smem>>
    %c23 = arith.constant 23 : index
    %23 = memref.load %arg1[%c23] : memref<32xf32, #tpu.memory_space<smem>>
    %c24 = arith.constant 24 : index
    %24 = memref.load %arg1[%c24] : memref<32xf32, #tpu.memory_space<smem>>
    %c25 = arith.constant 25 : index
    %25 = memref.load %arg1[%c25] : memref<32xf32, #tpu.memory_space<smem>>
    %c26 = arith.constant 26 : index
    %26 = memref.load %arg1[%c26] : memref<32xf32, #tpu.memory_space<smem>>
    %c27 = arith.constant 27 : index
    %27 = memref.load %arg1[%c27] : memref<32xf32, #tpu.memory_space<smem>>
    %c28 = arith.constant 28 : index
    %28 = memref.load %arg1[%c28] : memref<32xf32, #tpu.memory_space<smem>>
    %c29 = arith.constant 29 : index
    %29 = memref.load %arg1[%c29] : memref<32xf32, #tpu.memory_space<smem>>
    %c30 = arith.constant 30 : index
    %30 = memref.load %arg1[%c30] : memref<32xf32, #tpu.memory_space<smem>>
    %c31 = arith.constant 31 : index
    %31 = memref.load %arg1[%c31] : memref<32xf32, #tpu.memory_space<smem>>
    %c0_0 = arith.constant 0 : index
    %32 = memref.load %arg2[%c0_0] : memref<16xf32, #tpu.memory_space<smem>>
    %c1_1 = arith.constant 1 : index
    %33 = memref.load %arg2[%c1_1] : memref<16xf32, #tpu.memory_space<smem>>
    %c2_2 = arith.constant 2 : index
    %34 = memref.load %arg2[%c2_2] : memref<16xf32, #tpu.memory_space<smem>>
    %c3_3 = arith.constant 3 : index
    %35 = memref.load %arg2[%c3_3] : memref<16xf32, #tpu.memory_space<smem>>
    %c4_4 = arith.constant 4 : index
    %36 = memref.load %arg2[%c4_4] : memref<16xf32, #tpu.memory_space<smem>>
    %c5_5 = arith.constant 5 : index
    %37 = memref.load %arg2[%c5_5] : memref<16xf32, #tpu.memory_space<smem>>
    %c6_6 = arith.constant 6 : index
    %38 = memref.load %arg2[%c6_6] : memref<16xf32, #tpu.memory_space<smem>>
    %c7_7 = arith.constant 7 : index
    %39 = memref.load %arg2[%c7_7] : memref<16xf32, #tpu.memory_space<smem>>
    %c8_8 = arith.constant 8 : index
    %40 = memref.load %arg2[%c8_8] : memref<16xf32, #tpu.memory_space<smem>>
    %c9_9 = arith.constant 9 : index
    %41 = memref.load %arg2[%c9_9] : memref<16xf32, #tpu.memory_space<smem>>
    %c10_10 = arith.constant 10 : index
    %42 = memref.load %arg2[%c10_10] : memref<16xf32, #tpu.memory_space<smem>>
    %c11_11 = arith.constant 11 : index
    %43 = memref.load %arg2[%c11_11] : memref<16xf32, #tpu.memory_space<smem>>
    %c12_12 = arith.constant 12 : index
    %44 = memref.load %arg2[%c12_12] : memref<16xf32, #tpu.memory_space<smem>>
    %c13_13 = arith.constant 13 : index
    %45 = memref.load %arg2[%c13_13] : memref<16xf32, #tpu.memory_space<smem>>
    %c14_14 = arith.constant 14 : index
    %46 = memref.load %arg2[%c14_14] : memref<16xf32, #tpu.memory_space<smem>>
    %c15_15 = arith.constant 15 : index
    %47 = memref.load %arg2[%c15_15] : memref<16xf32, #tpu.memory_space<smem>>
    %c0_16 = arith.constant 0 : index
    %48 = memref.load %arg3[%c0_16] : memref<64xf32, #tpu.memory_space<smem>>
    %c1_17 = arith.constant 1 : index
    %49 = memref.load %arg3[%c1_17] : memref<64xf32, #tpu.memory_space<smem>>
    %c2_18 = arith.constant 2 : index
    %50 = memref.load %arg3[%c2_18] : memref<64xf32, #tpu.memory_space<smem>>
    %c3_19 = arith.constant 3 : index
    %51 = memref.load %arg3[%c3_19] : memref<64xf32, #tpu.memory_space<smem>>
    %c4_20 = arith.constant 4 : index
    %52 = memref.load %arg3[%c4_20] : memref<64xf32, #tpu.memory_space<smem>>
    %c5_21 = arith.constant 5 : index
    %53 = memref.load %arg3[%c5_21] : memref<64xf32, #tpu.memory_space<smem>>
    %c6_22 = arith.constant 6 : index
    %54 = memref.load %arg3[%c6_22] : memref<64xf32, #tpu.memory_space<smem>>
    %c7_23 = arith.constant 7 : index
    %55 = memref.load %arg3[%c7_23] : memref<64xf32, #tpu.memory_space<smem>>
    %c8_24 = arith.constant 8 : index
    %56 = memref.load %arg3[%c8_24] : memref<64xf32, #tpu.memory_space<smem>>
    %c9_25 = arith.constant 9 : index
    %57 = memref.load %arg3[%c9_25] : memref<64xf32, #tpu.memory_space<smem>>
    %c10_26 = arith.constant 10 : index
    %58 = memref.load %arg3[%c10_26] : memref<64xf32, #tpu.memory_space<smem>>
    %c11_27 = arith.constant 11 : index
    %59 = memref.load %arg3[%c11_27] : memref<64xf32, #tpu.memory_space<smem>>
    %c12_28 = arith.constant 12 : index
    %60 = memref.load %arg3[%c12_28] : memref<64xf32, #tpu.memory_space<smem>>
    %c13_29 = arith.constant 13 : index
    %61 = memref.load %arg3[%c13_29] : memref<64xf32, #tpu.memory_space<smem>>
    %c14_30 = arith.constant 14 : index
    %62 = memref.load %arg3[%c14_30] : memref<64xf32, #tpu.memory_space<smem>>
    %c15_31 = arith.constant 15 : index
    %63 = memref.load %arg3[%c15_31] : memref<64xf32, #tpu.memory_space<smem>>
    %c16_32 = arith.constant 16 : index
    %64 = memref.load %arg3[%c16_32] : memref<64xf32, #tpu.memory_space<smem>>
    %c17_33 = arith.constant 17 : index
    %65 = memref.load %arg3[%c17_33] : memref<64xf32, #tpu.memory_space<smem>>
    %c18_34 = arith.constant 18 : index
    %66 = memref.load %arg3[%c18_34] : memref<64xf32, #tpu.memory_space<smem>>
    %c19_35 = arith.constant 19 : index
    %67 = memref.load %arg3[%c19_35] : memref<64xf32, #tpu.memory_space<smem>>
    %c20_36 = arith.constant 20 : index
    %68 = memref.load %arg3[%c20_36] : memref<64xf32, #tpu.memory_space<smem>>
    %c21_37 = arith.constant 21 : index
    %69 = memref.load %arg3[%c21_37] : memref<64xf32, #tpu.memory_space<smem>>
    %c22_38 = arith.constant 22 : index
    %70 = memref.load %arg3[%c22_38] : memref<64xf32, #tpu.memory_space<smem>>
    %c23_39 = arith.constant 23 : index
    %71 = memref.load %arg3[%c23_39] : memref<64xf32, #tpu.memory_space<smem>>
    %c24_40 = arith.constant 24 : index
    %72 = memref.load %arg3[%c24_40] : memref<64xf32, #tpu.memory_space<smem>>
    %c25_41 = arith.constant 25 : index
    %73 = memref.load %arg3[%c25_41] : memref<64xf32, #tpu.memory_space<smem>>
    %c26_42 = arith.constant 26 : index
    %74 = memref.load %arg3[%c26_42] : memref<64xf32, #tpu.memory_space<smem>>
    %c27_43 = arith.constant 27 : index
    %75 = memref.load %arg3[%c27_43] : memref<64xf32, #tpu.memory_space<smem>>
    %c28_44 = arith.constant 28 : index
    %76 = memref.load %arg3[%c28_44] : memref<64xf32, #tpu.memory_space<smem>>
    %c29_45 = arith.constant 29 : index
    %77 = memref.load %arg3[%c29_45] : memref<64xf32, #tpu.memory_space<smem>>
    %c30_46 = arith.constant 30 : index
    %78 = memref.load %arg3[%c30_46] : memref<64xf32, #tpu.memory_space<smem>>
    %c31_47 = arith.constant 31 : index
    %79 = memref.load %arg3[%c31_47] : memref<64xf32, #tpu.memory_space<smem>>
    %c32 = arith.constant 32 : index
    %80 = memref.load %arg3[%c32] : memref<64xf32, #tpu.memory_space<smem>>
    %c33 = arith.constant 33 : index
    %81 = memref.load %arg3[%c33] : memref<64xf32, #tpu.memory_space<smem>>
    %c34 = arith.constant 34 : index
    %82 = memref.load %arg3[%c34] : memref<64xf32, #tpu.memory_space<smem>>
    %c35 = arith.constant 35 : index
    %83 = memref.load %arg3[%c35] : memref<64xf32, #tpu.memory_space<smem>>
    %c36 = arith.constant 36 : index
    %84 = memref.load %arg3[%c36] : memref<64xf32, #tpu.memory_space<smem>>
    %c37 = arith.constant 37 : index
    %85 = memref.load %arg3[%c37] : memref<64xf32, #tpu.memory_space<smem>>
    %c38 = arith.constant 38 : index
    %86 = memref.load %arg3[%c38] : memref<64xf32, #tpu.memory_space<smem>>
    %c39 = arith.constant 39 : index
    %87 = memref.load %arg3[%c39] : memref<64xf32, #tpu.memory_space<smem>>
    %c40 = arith.constant 40 : index
    %88 = memref.load %arg3[%c40] : memref<64xf32, #tpu.memory_space<smem>>
    %c41 = arith.constant 41 : index
    %89 = memref.load %arg3[%c41] : memref<64xf32, #tpu.memory_space<smem>>
    %c42 = arith.constant 42 : index
    %90 = memref.load %arg3[%c42] : memref<64xf32, #tpu.memory_space<smem>>
    %c43 = arith.constant 43 : index
    %91 = memref.load %arg3[%c43] : memref<64xf32, #tpu.memory_space<smem>>
    %c44 = arith.constant 44 : index
    %92 = memref.load %arg3[%c44] : memref<64xf32, #tpu.memory_space<smem>>
    %c45 = arith.constant 45 : index
    %93 = memref.load %arg3[%c45] : memref<64xf32, #tpu.memory_space<smem>>
    %c46 = arith.constant 46 : index
    %94 = memref.load %arg3[%c46] : memref<64xf32, #tpu.memory_space<smem>>
    %c47 = arith.constant 47 : index
    %95 = memref.load %arg3[%c47] : memref<64xf32, #tpu.memory_space<smem>>
    %c48 = arith.constant 48 : index
    %96 = memref.load %arg3[%c48] : memref<64xf32, #tpu.memory_space<smem>>
    %c49 = arith.constant 49 : index
    %97 = memref.load %arg3[%c49] : memref<64xf32, #tpu.memory_space<smem>>
    %c50 = arith.constant 50 : index
    %98 = memref.load %arg3[%c50] : memref<64xf32, #tpu.memory_space<smem>>
    %c51 = arith.constant 51 : index
    %99 = memref.load %arg3[%c51] : memref<64xf32, #tpu.memory_space<smem>>
    %c52 = arith.constant 52 : index
    %100 = memref.load %arg3[%c52] : memref<64xf32, #tpu.memory_space<smem>>
    %c53 = arith.constant 53 : index
    %101 = memref.load %arg3[%c53] : memref<64xf32, #tpu.memory_space<smem>>
    %c54 = arith.constant 54 : index
    %102 = memref.load %arg3[%c54] : memref<64xf32, #tpu.memory_space<smem>>
    %c55 = arith.constant 55 : index
    %103 = memref.load %arg3[%c55] : memref<64xf32, #tpu.memory_space<smem>>
    %c56 = arith.constant 56 : index
    %104 = memref.load %arg3[%c56] : memref<64xf32, #tpu.memory_space<smem>>
    %c57 = arith.constant 57 : index
    %105 = memref.load %arg3[%c57] : memref<64xf32, #tpu.memory_space<smem>>
    %c58 = arith.constant 58 : index
    %106 = memref.load %arg3[%c58] : memref<64xf32, #tpu.memory_space<smem>>
    %c59 = arith.constant 59 : index
    %107 = memref.load %arg3[%c59] : memref<64xf32, #tpu.memory_space<smem>>
    %c60 = arith.constant 60 : index
    %108 = memref.load %arg3[%c60] : memref<64xf32, #tpu.memory_space<smem>>
    %c61 = arith.constant 61 : index
    %109 = memref.load %arg3[%c61] : memref<64xf32, #tpu.memory_space<smem>>
    %c62 = arith.constant 62 : index
    %110 = memref.load %arg3[%c62] : memref<64xf32, #tpu.memory_space<smem>>
    %c63 = arith.constant 63 : index
    %111 = memref.load %arg3[%c63] : memref<64xf32, #tpu.memory_space<smem>>
    %c0_48 = arith.constant 0 : index
    %112 = memref.load %arg4[%c0_48] : memref<4xf32, #tpu.memory_space<smem>>
    %c1_49 = arith.constant 1 : index
    %113 = memref.load %arg4[%c1_49] : memref<4xf32, #tpu.memory_space<smem>>
    %c2_50 = arith.constant 2 : index
    %114 = memref.load %arg4[%c2_50] : memref<4xf32, #tpu.memory_space<smem>>
    %c3_51 = arith.constant 3 : index
    %115 = memref.load %arg4[%c3_51] : memref<4xf32, #tpu.memory_space<smem>>
    %c0_i32 = arith.constant 0 : i32
    %c3_i32 = arith.constant 3 : i32
    %116 = arith.muli %c0_i32, %c3_i32 : i32
    %117 = tpu.assume_multiple %116, 3 : i32
    %c0_52 = arith.constant 0 : index
    %118 = arith.index_cast %117 : i32 to index
    %c0_53 = arith.constant 0 : index
    %119 = vector.load %arg5[%c0_52, %118, %c0_53] : memref<2x3x128xf32, #tpu.memory_space<vmem>>, vector<1x3x128xf32>
    %120 = vector.shape_cast %119 : vector<1x3x128xf32> to vector<3x128xf32>
    %c1_54 = arith.constant 1 : index
    %121 = arith.index_cast %117 : i32 to index
    %c0_55 = arith.constant 0 : index
    %122 = vector.load %arg5[%c1_54, %121, %c0_55] : memref<2x3x128xf32, #tpu.memory_space<vmem>>, vector<1x3x128xf32>
    %123 = vector.shape_cast %122 : vector<1x3x128xf32> to vector<3x128xf32>
    %124 = vector.broadcast %0 : f32 to vector<3x128xf32>
    %125 = arith.mulf %124, %120 : vector<3x128xf32>
    %126 = vector.broadcast %16 : f32 to vector<3x128xf32>
    %127 = arith.mulf %126, %123 : vector<3x128xf32>
    %128 = arith.addf %125, %127 : vector<3x128xf32>
    %129 = vector.broadcast %32 : f32 to vector<3x128xf32>
    %130 = arith.addf %128, %129 : vector<3x128xf32>
    %cst = arith.constant 0.000000e+00 : f32
    %131 = vector.broadcast %cst : f32 to vector<3x128xf32>
    %132 = arith.maximumf %130, %131 : vector<3x128xf32>
    %133 = vector.broadcast %48 : f32 to vector<3x128xf32>
    %134 = arith.mulf %133, %132 : vector<3x128xf32>
    %135 = vector.broadcast %112 : f32 to vector<3x128xf32>
    %136 = arith.addf %134, %135 : vector<3x128xf32>
    %137 = vector.broadcast %49 : f32 to vector<3x128xf32>
    %138 = arith.mulf %137, %132 : vector<3x128xf32>
    %139 = vector.broadcast %113 : f32 to vector<3x128xf32>
    %140 = arith.addf %138, %139 : vector<3x128xf32>
    %141 = vector.broadcast %50 : f32 to vector<3x128xf32>
    %142 = arith.mulf %141, %132 : vector<3x128xf32>
    %143 = vector.broadcast %114 : f32 to vector<3x128xf32>
    %144 = arith.addf %142, %143 : vector<3x128xf32>
    %145 = vector.broadcast %51 : f32 to vector<3x128xf32>
    %146 = arith.mulf %145, %132 : vector<3x128xf32>
    %147 = vector.broadcast %115 : f32 to vector<3x128xf32>
    %148 = arith.addf %146, %147 : vector<3x128xf32>
    %149 = vector.broadcast %1 : f32 to vector<3x128xf32>
    %150 = arith.mulf %149, %120 : vector<3x128xf32>
    %151 = vector.broadcast %17 : f32 to vector<3x128xf32>
    %152 = arith.mulf %151, %123 : vector<3x128xf32>
    %153 = arith.addf %150, %152 : vector<3x128xf32>
    %154 = vector.broadcast %33 : f32 to vector<3x128xf32>
    %155 = arith.addf %153, %154 : vector<3x128xf32>
    %cst_56 = arith.constant 0.000000e+00 : f32
    %156 = vector.broadcast %cst_56 : f32 to vector<3x128xf32>
    %157 = arith.maximumf %155, %156 : vector<3x128xf32>
    %158 = vector.broadcast %52 : f32 to vector<3x128xf32>
    %159 = arith.mulf %158, %157 : vector<3x128xf32>
    %160 = arith.addf %136, %159 : vector<3x128xf32>
    %161 = vector.broadcast %53 : f32 to vector<3x128xf32>
    %162 = arith.mulf %161, %157 : vector<3x128xf32>
    %163 = arith.addf %140, %162 : vector<3x128xf32>
    %164 = vector.broadcast %54 : f32 to vector<3x128xf32>
    %165 = arith.mulf %164, %157 : vector<3x128xf32>
    %166 = arith.addf %144, %165 : vector<3x128xf32>
    %167 = vector.broadcast %55 : f32 to vector<3x128xf32>
    %168 = arith.mulf %167, %157 : vector<3x128xf32>
    %169 = arith.addf %148, %168 : vector<3x128xf32>
    %170 = vector.broadcast %2 : f32 to vector<3x128xf32>
    %171 = arith.mulf %170, %120 : vector<3x128xf32>
    %172 = vector.broadcast %18 : f32 to vector<3x128xf32>
    %173 = arith.mulf %172, %123 : vector<3x128xf32>
    %174 = arith.addf %171, %173 : vector<3x128xf32>
    %175 = vector.broadcast %34 : f32 to vector<3x128xf32>
    %176 = arith.addf %174, %175 : vector<3x128xf32>
    %cst_57 = arith.constant 0.000000e+00 : f32
    %177 = vector.broadcast %cst_57 : f32 to vector<3x128xf32>
    %178 = arith.maximumf %176, %177 : vector<3x128xf32>
    %179 = vector.broadcast %56 : f32 to vector<3x128xf32>
    %180 = arith.mulf %179, %178 : vector<3x128xf32>
    %181 = arith.addf %160, %180 : vector<3x128xf32>
    %182 = vector.broadcast %57 : f32 to vector<3x128xf32>
    %183 = arith.mulf %182, %178 : vector<3x128xf32>
    %184 = arith.addf %163, %183 : vector<3x128xf32>
    %185 = vector.broadcast %58 : f32 to vector<3x128xf32>
    %186 = arith.mulf %185, %178 : vector<3x128xf32>
    %187 = arith.addf %166, %186 : vector<3x128xf32>
    %188 = vector.broadcast %59 : f32 to vector<3x128xf32>
    %189 = arith.mulf %188, %178 : vector<3x128xf32>
    %190 = arith.addf %169, %189 : vector<3x128xf32>
    %191 = vector.broadcast %3 : f32 to vector<3x128xf32>
    %192 = arith.mulf %191, %120 : vector<3x128xf32>
    %193 = vector.broadcast %19 : f32 to vector<3x128xf32>
    %194 = arith.mulf %193, %123 : vector<3x128xf32>
    %195 = arith.addf %192, %194 : vector<3x128xf32>
    %196 = vector.broadcast %35 : f32 to vector<3x128xf32>
    %197 = arith.addf %195, %196 : vector<3x128xf32>
    %cst_58 = arith.constant 0.000000e+00 : f32
    %198 = vector.broadcast %cst_58 : f32 to vector<3x128xf32>
    %199 = arith.maximumf %197, %198 : vector<3x128xf32>
    %200 = vector.broadcast %60 : f32 to vector<3x128xf32>
    %201 = arith.mulf %200, %199 : vector<3x128xf32>
    %202 = arith.addf %181, %201 : vector<3x128xf32>
    %203 = vector.broadcast %61 : f32 to vector<3x128xf32>
    %204 = arith.mulf %203, %199 : vector<3x128xf32>
    %205 = arith.addf %184, %204 : vector<3x128xf32>
    %206 = vector.broadcast %62 : f32 to vector<3x128xf32>
    %207 = arith.mulf %206, %199 : vector<3x128xf32>
    %208 = arith.addf %187, %207 : vector<3x128xf32>
    %209 = vector.broadcast %63 : f32 to vector<3x128xf32>
    %210 = arith.mulf %209, %199 : vector<3x128xf32>
    %211 = arith.addf %190, %210 : vector<3x128xf32>
    %212 = vector.broadcast %4 : f32 to vector<3x128xf32>
    %213 = arith.mulf %212, %120 : vector<3x128xf32>
    %214 = vector.broadcast %20 : f32 to vector<3x128xf32>
    %215 = arith.mulf %214, %123 : vector<3x128xf32>
    %216 = arith.addf %213, %215 : vector<3x128xf32>
    %217 = vector.broadcast %36 : f32 to vector<3x128xf32>
    %218 = arith.addf %216, %217 : vector<3x128xf32>
    %cst_59 = arith.constant 0.000000e+00 : f32
    %219 = vector.broadcast %cst_59 : f32 to vector<3x128xf32>
    %220 = arith.maximumf %218, %219 : vector<3x128xf32>
    %221 = vector.broadcast %64 : f32 to vector<3x128xf32>
    %222 = arith.mulf %221, %220 : vector<3x128xf32>
    %223 = arith.addf %202, %222 : vector<3x128xf32>
    %224 = vector.broadcast %65 : f32 to vector<3x128xf32>
    %225 = arith.mulf %224, %220 : vector<3x128xf32>
    %226 = arith.addf %205, %225 : vector<3x128xf32>
    %227 = vector.broadcast %66 : f32 to vector<3x128xf32>
    %228 = arith.mulf %227, %220 : vector<3x128xf32>
    %229 = arith.addf %208, %228 : vector<3x128xf32>
    %230 = vector.broadcast %67 : f32 to vector<3x128xf32>
    %231 = arith.mulf %230, %220 : vector<3x128xf32>
    %232 = arith.addf %211, %231 : vector<3x128xf32>
    %233 = vector.broadcast %5 : f32 to vector<3x128xf32>
    %234 = arith.mulf %233, %120 : vector<3x128xf32>
    %235 = vector.broadcast %21 : f32 to vector<3x128xf32>
    %236 = arith.mulf %235, %123 : vector<3x128xf32>
    %237 = arith.addf %234, %236 : vector<3x128xf32>
    %238 = vector.broadcast %37 : f32 to vector<3x128xf32>
    %239 = arith.addf %237, %238 : vector<3x128xf32>
    %cst_60 = arith.constant 0.000000e+00 : f32
    %240 = vector.broadcast %cst_60 : f32 to vector<3x128xf32>
    %241 = arith.maximumf %239, %240 : vector<3x128xf32>
    %242 = vector.broadcast %68 : f32 to vector<3x128xf32>
    %243 = arith.mulf %242, %241 : vector<3x128xf32>
    %244 = arith.addf %223, %243 : vector<3x128xf32>
    %245 = vector.broadcast %69 : f32 to vector<3x128xf32>
    %246 = arith.mulf %245, %241 : vector<3x128xf32>
    %247 = arith.addf %226, %246 : vector<3x128xf32>
    %248 = vector.broadcast %70 : f32 to vector<3x128xf32>
    %249 = arith.mulf %248, %241 : vector<3x128xf32>
    %250 = arith.addf %229, %249 : vector<3x128xf32>
    %251 = vector.broadcast %71 : f32 to vector<3x128xf32>
    %252 = arith.mulf %251, %241 : vector<3x128xf32>
    %253 = arith.addf %232, %252 : vector<3x128xf32>
    %254 = vector.broadcast %6 : f32 to vector<3x128xf32>
    %255 = arith.mulf %254, %120 : vector<3x128xf32>
    %256 = vector.broadcast %22 : f32 to vector<3x128xf32>
    %257 = arith.mulf %256, %123 : vector<3x128xf32>
    %258 = arith.addf %255, %257 : vector<3x128xf32>
    %259 = vector.broadcast %38 : f32 to vector<3x128xf32>
    %260 = arith.addf %258, %259 : vector<3x128xf32>
    %cst_61 = arith.constant 0.000000e+00 : f32
    %261 = vector.broadcast %cst_61 : f32 to vector<3x128xf32>
    %262 = arith.maximumf %260, %261 : vector<3x128xf32>
    %263 = vector.broadcast %72 : f32 to vector<3x128xf32>
    %264 = arith.mulf %263, %262 : vector<3x128xf32>
    %265 = arith.addf %244, %264 : vector<3x128xf32>
    %266 = vector.broadcast %73 : f32 to vector<3x128xf32>
    %267 = arith.mulf %266, %262 : vector<3x128xf32>
    %268 = arith.addf %247, %267 : vector<3x128xf32>
    %269 = vector.broadcast %74 : f32 to vector<3x128xf32>
    %270 = arith.mulf %269, %262 : vector<3x128xf32>
    %271 = arith.addf %250, %270 : vector<3x128xf32>
    %272 = vector.broadcast %75 : f32 to vector<3x128xf32>
    %273 = arith.mulf %272, %262 : vector<3x128xf32>
    %274 = arith.addf %253, %273 : vector<3x128xf32>
    %275 = vector.broadcast %7 : f32 to vector<3x128xf32>
    %276 = arith.mulf %275, %120 : vector<3x128xf32>
    %277 = vector.broadcast %23 : f32 to vector<3x128xf32>
    %278 = arith.mulf %277, %123 : vector<3x128xf32>
    %279 = arith.addf %276, %278 : vector<3x128xf32>
    %280 = vector.broadcast %39 : f32 to vector<3x128xf32>
    %281 = arith.addf %279, %280 : vector<3x128xf32>
    %cst_62 = arith.constant 0.000000e+00 : f32
    %282 = vector.broadcast %cst_62 : f32 to vector<3x128xf32>
    %283 = arith.maximumf %281, %282 : vector<3x128xf32>
    %284 = vector.broadcast %76 : f32 to vector<3x128xf32>
    %285 = arith.mulf %284, %283 : vector<3x128xf32>
    %286 = arith.addf %265, %285 : vector<3x128xf32>
    %287 = vector.broadcast %77 : f32 to vector<3x128xf32>
    %288 = arith.mulf %287, %283 : vector<3x128xf32>
    %289 = arith.addf %268, %288 : vector<3x128xf32>
    %290 = vector.broadcast %78 : f32 to vector<3x128xf32>
    %291 = arith.mulf %290, %283 : vector<3x128xf32>
    %292 = arith.addf %271, %291 : vector<3x128xf32>
    %293 = vector.broadcast %79 : f32 to vector<3x128xf32>
    %294 = arith.mulf %293, %283 : vector<3x128xf32>
    %295 = arith.addf %274, %294 : vector<3x128xf32>
    %296 = vector.broadcast %8 : f32 to vector<3x128xf32>
    %297 = arith.mulf %296, %120 : vector<3x128xf32>
    %298 = vector.broadcast %24 : f32 to vector<3x128xf32>
    %299 = arith.mulf %298, %123 : vector<3x128xf32>
    %300 = arith.addf %297, %299 : vector<3x128xf32>
    %301 = vector.broadcast %40 : f32 to vector<3x128xf32>
    %302 = arith.addf %300, %301 : vector<3x128xf32>
    %cst_63 = arith.constant 0.000000e+00 : f32
    %303 = vector.broadcast %cst_63 : f32 to vector<3x128xf32>
    %304 = arith.maximumf %302, %303 : vector<3x128xf32>
    %305 = vector.broadcast %80 : f32 to vector<3x128xf32>
    %306 = arith.mulf %305, %304 : vector<3x128xf32>
    %307 = arith.addf %286, %306 : vector<3x128xf32>
    %308 = vector.broadcast %81 : f32 to vector<3x128xf32>
    %309 = arith.mulf %308, %304 : vector<3x128xf32>
    %310 = arith.addf %289, %309 : vector<3x128xf32>
    %311 = vector.broadcast %82 : f32 to vector<3x128xf32>
    %312 = arith.mulf %311, %304 : vector<3x128xf32>
    %313 = arith.addf %292, %312 : vector<3x128xf32>
    %314 = vector.broadcast %83 : f32 to vector<3x128xf32>
    %315 = arith.mulf %314, %304 : vector<3x128xf32>
    %316 = arith.addf %295, %315 : vector<3x128xf32>
    %317 = vector.broadcast %9 : f32 to vector<3x128xf32>
    %318 = arith.mulf %317, %120 : vector<3x128xf32>
    %319 = vector.broadcast %25 : f32 to vector<3x128xf32>
    %320 = arith.mulf %319, %123 : vector<3x128xf32>
    %321 = arith.addf %318, %320 : vector<3x128xf32>
    %322 = vector.broadcast %41 : f32 to vector<3x128xf32>
    %323 = arith.addf %321, %322 : vector<3x128xf32>
    %cst_64 = arith.constant 0.000000e+00 : f32
    %324 = vector.broadcast %cst_64 : f32 to vector<3x128xf32>
    %325 = arith.maximumf %323, %324 : vector<3x128xf32>
    %326 = vector.broadcast %84 : f32 to vector<3x128xf32>
    %327 = arith.mulf %326, %325 : vector<3x128xf32>
    %328 = arith.addf %307, %327 : vector<3x128xf32>
    %329 = vector.broadcast %85 : f32 to vector<3x128xf32>
    %330 = arith.mulf %329, %325 : vector<3x128xf32>
    %331 = arith.addf %310, %330 : vector<3x128xf32>
    %332 = vector.broadcast %86 : f32 to vector<3x128xf32>
    %333 = arith.mulf %332, %325 : vector<3x128xf32>
    %334 = arith.addf %313, %333 : vector<3x128xf32>
    %335 = vector.broadcast %87 : f32 to vector<3x128xf32>
    %336 = arith.mulf %335, %325 : vector<3x128xf32>
    %337 = arith.addf %316, %336 : vector<3x128xf32>
    %338 = vector.broadcast %10 : f32 to vector<3x128xf32>
    %339 = arith.mulf %338, %120 : vector<3x128xf32>
    %340 = vector.broadcast %26 : f32 to vector<3x128xf32>
    %341 = arith.mulf %340, %123 : vector<3x128xf32>
    %342 = arith.addf %339, %341 : vector<3x128xf32>
    %343 = vector.broadcast %42 : f32 to vector<3x128xf32>
    %344 = arith.addf %342, %343 : vector<3x128xf32>
    %cst_65 = arith.constant 0.000000e+00 : f32
    %345 = vector.broadcast %cst_65 : f32 to vector<3x128xf32>
    %346 = arith.maximumf %344, %345 : vector<3x128xf32>
    %347 = vector.broadcast %88 : f32 to vector<3x128xf32>
    %348 = arith.mulf %347, %346 : vector<3x128xf32>
    %349 = arith.addf %328, %348 : vector<3x128xf32>
    %350 = vector.broadcast %89 : f32 to vector<3x128xf32>
    %351 = arith.mulf %350, %346 : vector<3x128xf32>
    %352 = arith.addf %331, %351 : vector<3x128xf32>
    %353 = vector.broadcast %90 : f32 to vector<3x128xf32>
    %354 = arith.mulf %353, %346 : vector<3x128xf32>
    %355 = arith.addf %334, %354 : vector<3x128xf32>
    %356 = vector.broadcast %91 : f32 to vector<3x128xf32>
    %357 = arith.mulf %356, %346 : vector<3x128xf32>
    %358 = arith.addf %337, %357 : vector<3x128xf32>
    %359 = vector.broadcast %11 : f32 to vector<3x128xf32>
    %360 = arith.mulf %359, %120 : vector<3x128xf32>
    %361 = vector.broadcast %27 : f32 to vector<3x128xf32>
    %362 = arith.mulf %361, %123 : vector<3x128xf32>
    %363 = arith.addf %360, %362 : vector<3x128xf32>
    %364 = vector.broadcast %43 : f32 to vector<3x128xf32>
    %365 = arith.addf %363, %364 : vector<3x128xf32>
    %cst_66 = arith.constant 0.000000e+00 : f32
    %366 = vector.broadcast %cst_66 : f32 to vector<3x128xf32>
    %367 = arith.maximumf %365, %366 : vector<3x128xf32>
    %368 = vector.broadcast %92 : f32 to vector<3x128xf32>
    %369 = arith.mulf %368, %367 : vector<3x128xf32>
    %370 = arith.addf %349, %369 : vector<3x128xf32>
    %371 = vector.broadcast %93 : f32 to vector<3x128xf32>
    %372 = arith.mulf %371, %367 : vector<3x128xf32>
    %373 = arith.addf %352, %372 : vector<3x128xf32>
    %374 = vector.broadcast %94 : f32 to vector<3x128xf32>
    %375 = arith.mulf %374, %367 : vector<3x128xf32>
    %376 = arith.addf %355, %375 : vector<3x128xf32>
    %377 = vector.broadcast %95 : f32 to vector<3x128xf32>
    %378 = arith.mulf %377, %367 : vector<3x128xf32>
    %379 = arith.addf %358, %378 : vector<3x128xf32>
    %380 = vector.broadcast %12 : f32 to vector<3x128xf32>
    %381 = arith.mulf %380, %120 : vector<3x128xf32>
    %382 = vector.broadcast %28 : f32 to vector<3x128xf32>
    %383 = arith.mulf %382, %123 : vector<3x128xf32>
    %384 = arith.addf %381, %383 : vector<3x128xf32>
    %385 = vector.broadcast %44 : f32 to vector<3x128xf32>
    %386 = arith.addf %384, %385 : vector<3x128xf32>
    %cst_67 = arith.constant 0.000000e+00 : f32
    %387 = vector.broadcast %cst_67 : f32 to vector<3x128xf32>
    %388 = arith.maximumf %386, %387 : vector<3x128xf32>
    %389 = vector.broadcast %96 : f32 to vector<3x128xf32>
    %390 = arith.mulf %389, %388 : vector<3x128xf32>
    %391 = arith.addf %370, %390 : vector<3x128xf32>
    %392 = vector.broadcast %97 : f32 to vector<3x128xf32>
    %393 = arith.mulf %392, %388 : vector<3x128xf32>
    %394 = arith.addf %373, %393 : vector<3x128xf32>
    %395 = vector.broadcast %98 : f32 to vector<3x128xf32>
    %396 = arith.mulf %395, %388 : vector<3x128xf32>
    %397 = arith.addf %376, %396 : vector<3x128xf32>
    %398 = vector.broadcast %99 : f32 to vector<3x128xf32>
    %399 = arith.mulf %398, %388 : vector<3x128xf32>
    %400 = arith.addf %379, %399 : vector<3x128xf32>
    %401 = vector.broadcast %13 : f32 to vector<3x128xf32>
    %402 = arith.mulf %401, %120 : vector<3x128xf32>
    %403 = vector.broadcast %29 : f32 to vector<3x128xf32>
    %404 = arith.mulf %403, %123 : vector<3x128xf32>
    %405 = arith.addf %402, %404 : vector<3x128xf32>
    %406 = vector.broadcast %45 : f32 to vector<3x128xf32>
    %407 = arith.addf %405, %406 : vector<3x128xf32>
    %cst_68 = arith.constant 0.000000e+00 : f32
    %408 = vector.broadcast %cst_68 : f32 to vector<3x128xf32>
    %409 = arith.maximumf %407, %408 : vector<3x128xf32>
    %410 = vector.broadcast %100 : f32 to vector<3x128xf32>
    %411 = arith.mulf %410, %409 : vector<3x128xf32>
    %412 = arith.addf %391, %411 : vector<3x128xf32>
    %413 = vector.broadcast %101 : f32 to vector<3x128xf32>
    %414 = arith.mulf %413, %409 : vector<3x128xf32>
    %415 = arith.addf %394, %414 : vector<3x128xf32>
    %416 = vector.broadcast %102 : f32 to vector<3x128xf32>
    %417 = arith.mulf %416, %409 : vector<3x128xf32>
    %418 = arith.addf %397, %417 : vector<3x128xf32>
    %419 = vector.broadcast %103 : f32 to vector<3x128xf32>
    %420 = arith.mulf %419, %409 : vector<3x128xf32>
    %421 = arith.addf %400, %420 : vector<3x128xf32>
    %422 = vector.broadcast %14 : f32 to vector<3x128xf32>
    %423 = arith.mulf %422, %120 : vector<3x128xf32>
    %424 = vector.broadcast %30 : f32 to vector<3x128xf32>
    %425 = arith.mulf %424, %123 : vector<3x128xf32>
    %426 = arith.addf %423, %425 : vector<3x128xf32>
    %427 = vector.broadcast %46 : f32 to vector<3x128xf32>
    %428 = arith.addf %426, %427 : vector<3x128xf32>
    %cst_69 = arith.constant 0.000000e+00 : f32
    %429 = vector.broadcast %cst_69 : f32 to vector<3x128xf32>
    %430 = arith.maximumf %428, %429 : vector<3x128xf32>
    %431 = vector.broadcast %104 : f32 to vector<3x128xf32>
    %432 = arith.mulf %431, %430 : vector<3x128xf32>
    %433 = arith.addf %412, %432 : vector<3x128xf32>
    %434 = vector.broadcast %105 : f32 to vector<3x128xf32>
    %435 = arith.mulf %434, %430 : vector<3x128xf32>
    %436 = arith.addf %415, %435 : vector<3x128xf32>
    %437 = vector.broadcast %106 : f32 to vector<3x128xf32>
    %438 = arith.mulf %437, %430 : vector<3x128xf32>
    %439 = arith.addf %418, %438 : vector<3x128xf32>
    %440 = vector.broadcast %107 : f32 to vector<3x128xf32>
    %441 = arith.mulf %440, %430 : vector<3x128xf32>
    %442 = arith.addf %421, %441 : vector<3x128xf32>
    %443 = vector.broadcast %15 : f32 to vector<3x128xf32>
    %444 = arith.mulf %443, %120 : vector<3x128xf32>
    %445 = vector.broadcast %31 : f32 to vector<3x128xf32>
    %446 = arith.mulf %445, %123 : vector<3x128xf32>
    %447 = arith.addf %444, %446 : vector<3x128xf32>
    %448 = vector.broadcast %47 : f32 to vector<3x128xf32>
    %449 = arith.addf %447, %448 : vector<3x128xf32>
    %cst_70 = arith.constant 0.000000e+00 : f32
    %450 = vector.broadcast %cst_70 : f32 to vector<3x128xf32>
    %451 = arith.maximumf %449, %450 : vector<3x128xf32>
    %452 = vector.broadcast %108 : f32 to vector<3x128xf32>
    %453 = arith.mulf %452, %451 : vector<3x128xf32>
    %454 = arith.addf %433, %453 : vector<3x128xf32>
    %455 = vector.broadcast %109 : f32 to vector<3x128xf32>
    %456 = arith.mulf %455, %451 : vector<3x128xf32>
    %457 = arith.addf %436, %456 : vector<3x128xf32>
    %458 = vector.broadcast %110 : f32 to vector<3x128xf32>
    %459 = arith.mulf %458, %451 : vector<3x128xf32>
    %460 = arith.addf %439, %459 : vector<3x128xf32>
    %461 = vector.broadcast %111 : f32 to vector<3x128xf32>
    %462 = arith.mulf %461, %451 : vector<3x128xf32>
    %463 = arith.addf %442, %462 : vector<3x128xf32>
    %c0_71 = arith.constant 0 : index
    %464 = arith.index_cast %117 : i32 to index
    %c0_72 = arith.constant 0 : index
    %465 = vector.load %arg6[%c0_71, %464, %c0_72] : memref<4x3x128xf32, #tpu.memory_space<vmem>>, vector<1x3x128xf32>
    %466 = vector.shape_cast %465 : vector<1x3x128xf32> to vector<3x128xf32>
    %467 = vector.shape_cast %454 : vector<3x128xf32> to vector<1x3x128xf32>
    tpu.vector_store %arg6[%c0_71, %464, %c0_72], %467 {strides = array<i32>} : memref<4x3x128xf32, #tpu.memory_space<vmem>>, vector<1x3x128xf32>,
    %c1_73 = arith.constant 1 : index
    %468 = arith.index_cast %117 : i32 to index
    %c0_74 = arith.constant 0 : index
    %469 = vector.load %arg6[%c1_73, %468, %c0_74] : memref<4x3x128xf32, #tpu.memory_space<vmem>>, vector<1x3x128xf32>
    %470 = vector.shape_cast %469 : vector<1x3x128xf32> to vector<3x128xf32>
    %471 = vector.shape_cast %457 : vector<3x128xf32> to vector<1x3x128xf32>
    tpu.vector_store %arg6[%c1_73, %468, %c0_74], %471 {strides = array<i32>} : memref<4x3x128xf32, #tpu.memory_space<vmem>>, vector<1x3x128xf32>,
    %c2_75 = arith.constant 2 : index
    %472 = arith.index_cast %117 : i32 to index
    %c0_76 = arith.constant 0 : index
    %473 = vector.load %arg6[%c2_75, %472, %c0_76] : memref<4x3x128xf32, #tpu.memory_space<vmem>>, vector<1x3x128xf32>
    %474 = vector.shape_cast %473 : vector<1x3x128xf32> to vector<3x128xf32>
    %475 = vector.shape_cast %460 : vector<3x128xf32> to vector<1x3x128xf32>
    tpu.vector_store %arg6[%c2_75, %472, %c0_76], %475 {strides = array<i32>} : memref<4x3x128xf32, #tpu.memory_space<vmem>>, vector<1x3x128xf32>,
    %c3_77 = arith.constant 3 : index
    %476 = arith.index_cast %117 : i32 to index
    %c0_78 = arith.constant 0 : index
    %477 = vector.load %arg6[%c3_77, %476, %c0_78] : memref<4x3x128xf32, #tpu.memory_space<vmem>>, vector<1x3x128xf32>
    %478 = vector.shape_cast %477 : vector<1x3x128xf32> to vector<3x128xf32>
    %479 = vector.shape_cast %463 : vector<3x128xf32> to vector<1x3x128xf32>
    tpu.vector_store %arg6[%c3_77, %476, %c0_78], %479 {strides = array<i32>} : memref<4x3x128xf32, #tpu.memory_space<vmem>>, vector<1x3x128xf32>,
    %c1_i32 = arith.constant 1 : i32
    return
  }
  func.func @transform_0(%arg0: i32) -> i32 {
    %c0_i32 = arith.constant 0 : i32
    %c0_i32_0 = arith.constant 0 : i32
    return %c0_i32 : i32
  }
  func.func @transform_1(%arg0: i32) -> i32 {
    %c0_i32 = arith.constant 0 : i32
    %c0_i32_0 = arith.constant 0 : i32
    return %c0_i32 : i32
  }
  func.func @transform_2(%arg0: i32) -> i32 {
    %c0_i32 = arith.constant 0 : i32
    %c0_i32_0 = arith.constant 0 : i32
    return %c0_i32 : i32
  }
  func.func @transform_3(%arg0: i32) -> i32 {
    %c0_i32 = arith.constant 0 : i32
    %c0_i32_0 = arith.constant 0 : i32
    return %c0_i32 : i32
  }
  func.func @transform_4(%arg0: i32) -> (i32, i32, i32) {
    %c0_i32 = arith.constant 0 : i32
    %c0_i32_0 = arith.constant 0 : i32
    %c0_i32_1 = arith.constant 0 : i32
    return %c0_i32, %arg0, %c0_i32_0 : i32, i32, i32
  }
  func.func @transform_5(%arg0: i32) -> (i32, i32, i32) {
    %c0_i32 = arith.constant 0 : i32
    %c0_i32_0 = arith.constant 0 : i32
    %c0_i32_1 = arith.constant 0 : i32
    return %c0_i32, %arg0, %c0_i32_0 : i32, i32, i32
  }
}

</mosaic_0001>

<llo_original>
// kernel: dot_controller_forward_pallas.1
$region0: #{dot_controller_forward_pallas.1}
  #allocation0 [shape = 'u32[]', space=smem, size = 0x4, offset = 0x4, fixed_abs, tag = 'smem constant byte address 0x4 - core index']
  #allocation1 [shape = 'u32[72,128]{1,0:T(1,128)}', space=vmem, size = 0x9000, scoped, tag = 'internal scratch']
  %s0 = inlined_call_operand.vmem [shape: f32[32], index: 0, kind: input, shape index: {}]
  %s1 = inlined_call_operand.vmem [shape: f32[16], index: 1, kind: input, shape index: {}]
  %s2 = inlined_call_operand.vmem [shape: f32[64], index: 2, kind: input, shape index: {}]
  %s3 = inlined_call_operand.vmem [shape: f32[4], index: 3, kind: input, shape index: {}]
  %s4 = inlined_call_operand.vmem [shape: f32[2,3,128], index: 4, kind: input, shape index: {}]
  %s5 = inlined_call_operand.vmem [shape: f32[4,3,128], index: 5, kind: output, shape index: {}]
  %s6 = sld [smem:[#allocation0]]
  $region46: #{dot_controller_forward_pallas.1} parent=0
    _
  %s8 = ssub.s32 1, %s6
  %s9 = scalar_select 0, %s8, %s6
  $region1: #{dot_controller_forward_pallas.1} parent=0
    #allocation2 [shape = 'u8[512]{0}', space=smem, size = 0x200, scoped, tag = 'input window, operand 0, single buffered']
    #allocation3 [shape = 's32[1]{0}', space=sflag, size = 0x4, scoped, tag = 'scoped memory for dot_controller_forward_pallas.1']
    #allocation4 [shape = 'u8[512]{0}', space=smem, size = 0x200, scoped, tag = 'input window, operand 1, single buffered']
    #allocation5 [shape = 's32[1]{0}', space=sflag, size = 0x4, scoped, tag = 'scoped memory for dot_controller_forward_pallas.1']
    #allocation6 [shape = 'u8[512]{0}', space=smem, size = 0x200, scoped, tag = 'input window, operand 2, single buffered']
    #allocation7 [shape = 'u8[512]{0}', space=smem, size = 0x200, scoped, tag = 'input window, operand 3, single buffered']
    #allocation8 [shape = 's32[1]{0}', space=sflag, size = 0x4, scoped, tag = 'scoped memory for dot_controller_forward_pallas.1']
    %10 = vsyncpa [#allocation3], 0
    %11 = vsyncpa [#allocation5], 0
    %12 = vsyncpa [#allocation8], 0
    // Predicated region
    $region2: #{dot_controller_forward_pallas.1} parent=1 // pred_check
      _
    $region3: #{dot_controller_forward_pallas.1} parent=1 // pred_check_branch
      %14 = sbr.rel (0) target = $region5
    $region4: #{dot_controller_forward_pallas.1} parent=1 // pred_region
      %16 = vsyncadd [#allocation3], 0
      %s18 = sshll.u32 %s0, 4
      %s19 = int_to_ptr.vmem [resolvable:$true] %s18
      %21 = dma.vmem_to_smem %s19, 16, [#allocation2], [#allocation3]
    $region5: #{dot_controller_forward_pallas.1} parent=1 // pred_fallthru
      _
    // Predicated region
    $region6: #{dot_controller_forward_pallas.1} parent=1 // pred_check
      _
    $region7: #{dot_controller_forward_pallas.1} parent=1 // pred_check_branch
      %23 = sbr.rel (0) target = $region9
    $region8: #{dot_controller_forward_pallas.1} parent=1 // pred_region
      %25 = vsyncadd [#allocation5], 0
      %s27 = sshll.u32 %s1, 4
      %s28 = int_to_ptr.vmem [resolvable:$true] %s27
      %30 = dma.vmem_to_smem %s28, 16, [#allocation4], [#allocation5]
    $region9: #{dot_controller_forward_pallas.1} parent=1 // pred_fallthru
      _
    // Predicated region
    $region10: #{dot_controller_forward_pallas.1} parent=1 // pred_check
      _
    $region11: #{dot_controller_forward_pallas.1} parent=1 // pred_check_branch
      %32 = sbr.rel (0) target = $region13
    $region12: #{dot_controller_forward_pallas.1} parent=1 // pred_region
      %34 = vsyncadd [#allocation5], 0
      %s36 = sshll.u32 %s2, 4
      %s37 = int_to_ptr.vmem [resolvable:$true] %s36
      %39 = dma.vmem_to_smem %s37, 16, [#allocation6], [#allocation5]
    $region13: #{dot_controller_forward_pallas.1} parent=1 // pred_fallthru
      _
    // Predicated region
    $region14: #{dot_controller_forward_pallas.1} parent=1 // pred_check
      _
    $region15: #{dot_controller_forward_pallas.1} parent=1 // pred_check_branch
      %41 = sbr.rel (0) target = $region17
    $region16: #{dot_controller_forward_pallas.1} parent=1 // pred_region
      %43 = vsyncadd [#allocation8], 0
      %s45 = sshll.u32 %s3, 4
      %s46 = int_to_ptr.vmem [resolvable:$true] %s45
      %48 = dma.vmem_to_smem %s46, 16, [#allocation7], [#allocation8]
    $region17: #{dot_controller_forward_pallas.1} parent=1 // pred_fallthru
      _
    // Predicated region
    $region18: #{dot_controller_forward_pallas.1} parent=1 // pred_check
      _
    $region19: #{dot_controller_forward_pallas.1} parent=1 // pred_check_branch
      %50 = sbr.rel (0) target = $region21
    $region20: #{dot_controller_forward_pallas.1} parent=1 // pred_region
      _
    $region21: #{dot_controller_forward_pallas.1} parent=1 // pred_fallthru
      _
    // Predicated region
    $region22: #{dot_controller_forward_pallas.1} parent=1 // pred_check
      _
    $region23: #{dot_controller_forward_pallas.1} parent=1 // pred_check_branch
      %52 = sbr.rel (0) target = $region25
    $region24: #{dot_controller_forward_pallas.1} parent=1 // pred_region
      %54 = dma.done [#allocation3], 16
    $region25: #{dot_controller_forward_pallas.1} parent=1 // pred_fallthru
      _
    // Predicated region
    $region26: #{dot_controller_forward_pallas.1} parent=1 // pred_check
      _
    $region27: #{dot_controller_forward_pallas.1} parent=1 // pred_check_branch
      %56 = sbr.rel (0) target = $region29
    $region28: #{dot_controller_forward_pallas.1} parent=1 // pred_region
      %58 = dma.done [#allocation5], 16
    $region29: #{dot_controller_forward_pallas.1} parent=1 // pred_fallthru
      _
    // Predicated region
    $region30: #{dot_controller_forward_pallas.1} parent=1 // pred_check
      _
    $region31: #{dot_controller_forward_pallas.1} parent=1 // pred_check_branch
      %60 = sbr.rel (0) target = $region33
    $region32: #{dot_controller_forward_pallas.1} parent=1 // pred_region
      %62 = dma.done [#allocation5], 16
    $region33: #{dot_controller_forward_pallas.1} parent=1 // pred_fallthru
      _
    // Predicated region
    $region34: #{dot_controller_forward_pallas.1} parent=1 // pred_check
      _
    $region35: #{dot_controller_forward_pallas.1} parent=1 // pred_check_branch
      %64 = sbr.rel (0) target = $region37
    $region36: #{dot_controller_forward_pallas.1} parent=1 // pred_region
      %66 = dma.done [#allocation8], 16
    $region37: #{dot_controller_forward_pallas.1} parent=1 // pred_fallthru
      _
    %67 = sfence
    %s68 = sld [smem:[#allocation2]]
    %s69 = sld [smem:[#allocation2 + $0x1]]
    %s70 = sld [smem:[#allocation2 + $0x2]]
    %s71 = sld [smem:[#allocation2 + $0x3]]
    %s72 = sld [smem:[#allocation2 + $0x4]]
    %s73 = sld [smem:[#allocation2 + $0x5]]
    %s74 = sld [smem:[#allocation2 + $0x6]]
    %s75 = sld [smem:[#allocation2 + $0x7]]
    %s76 = sld [smem:[#allocation2 + $0x8]]
    %s77 = sld [smem:[#allocation2 + $0x9]]
    %s78 = sld [smem:[#allocation2 + $0xa]]
    %s79 = sld [smem:[#allocation2 + $0xb]]
    %s80 = sld [smem:[#allocation2 + $0xc]]
    %s81 = sld [smem:[#allocation2 + $0xd]]
    %s82 = sld [smem:[#allocation2 + $0xe]]
    %s83 = sld [smem:[#allocation2 + $0xf]]
    %s84 = sld [smem:[#allocation2 + $0x10]]
    %s85 = sld [smem:[#allocation2 + $0x11]]
    %s86 = sld [smem:[#allocation2 + $0x12]]
    %s87 = sld [smem:[#allocation2 + $0x13]]
    %s88 = sld [smem:[#allocation2 + $0x14]]
    %s89 = sld [smem:[#allocation2 + $0x15]]
    %s90 = sld [smem:[#allocation2 + $0x16]]
    %s91 = sld [smem:[#allocation2 + $0x17]]
    %s92 = sld [smem:[#allocation2 + $0x18]]
    %s93 = sld [smem:[#allocation2 + $0x19]]
    %s94 = sld [smem:[#allocation2 + $0x1a]]
    %s95 = sld [smem:[#allocation2 + $0x1b]]
    %s96 = sld [smem:[#allocation2 + $0x1c]]
    %s97 = sld [smem:[#allocation2 + $0x1d]]
    %s98 = sld [smem:[#allocation2 + $0x1e]]
    %s99 = sld [smem:[#allocation2 + $0x1f]]
    %s100 = sld [smem:[#allocation4]]
    %s101 = sld [smem:[#allocation4 + $0x1]]
    %s102 = sld [smem:[#allocation4 + $0x2]]
    %s103 = sld [smem:[#allocation4 + $0x3]]
    %s104 = sld [smem:[#allocation4 + $0x4]]
    %s105 = sld [smem:[#allocation4 + $0x5]]
    %s106 = sld [smem:[#allocation4 + $0x6]]
    %s107 = sld [smem:[#allocation4 + $0x7]]
    %s108 = sld [smem:[#allocation4 + $0x8]]
    %s109 = sld [smem:[#allocation4 + $0x9]]
    %s110 = sld [smem:[#allocation4 + $0xa]]
    %s111 = sld [smem:[#allocation4 + $0xb]]
    %s112 = sld [smem:[#allocation4 + $0xc]]
    %s113 = sld [smem:[#allocation4 + $0xd]]
    %s114 = sld [smem:[#allocation4 + $0xe]]
    %s115 = sld [smem:[#allocation4 + $0xf]]
    %s116 = sld [smem:[#allocation6]]
    %s117 = sld [smem:[#allocation6 + $0x1]]
    %s118 = sld [smem:[#allocation6 + $0x2]]
    %s119 = sld [smem:[#allocation6 + $0x3]]
    %s120 = sld [smem:[#allocation6 + $0x4]]
    %s121 = sld [smem:[#allocation6 + $0x5]]
    %s122 = sld [smem:[#allocation6 + $0x6]]
    %s123 = sld [smem:[#allocation6 + $0x7]]
    %s124 = sld [smem:[#allocation6 + $0x8]]
    %s125 = sld [smem:[#allocation6 + $0x9]]
    %s126 = sld [smem:[#allocation6 + $0xa]]
    %s127 = sld [smem:[#allocation6 + $0xb]]
    %s128 = sld [smem:[#allocation6 + $0xc]]
    %s129 = sld [smem:[#allocation6 + $0xd]]
    %s130 = sld [smem:[#allocation6 + $0xe]]
    %s131 = sld [smem:[#allocation6 + $0xf]]
    %s132 = sld [smem:[#allocation6 + $0x10]]
    %s133 = sld [smem:[#allocation6 + $0x11]]
    %s134 = sld [smem:[#allocation6 + $0x12]]
    %s135 = sld [smem:[#allocation6 + $0x13]]
    %s136 = sld [smem:[#allocation6 + $0x14]]
    %s137 = sld [smem:[#allocation6 + $0x15]]
    %s138 = sld [smem:[#allocation6 + $0x16]]
    %s139 = sld [smem:[#allocation6 + $0x17]]
    %s140 = sld [smem:[#allocation6 + $0x18]]
    %s141 = sld [smem:[#allocation6 + $0x19]]
    %s142 = sld [smem:[#allocation6 + $0x1a]]
    %s143 = sld [smem:[#allocation6 + $0x1b]]
    %s144 = sld [smem:[#allocation6 + $0x1c]]
    %s145 = sld [smem:[#allocation6 + $0x1d]]
    %s146 = sld [smem:[#allocation6 + $0x1e]]
    %s147 = sld [smem:[#allocation6 + $0x1f]]
    %s148 = sld [smem:[#allocation6 + $0x20]]
    %s149 = sld [smem:[#allocation6 + $0x21]]
    %s150 = sld [smem:[#allocation6 + $0x22]]
    %s151 = sld [smem:[#allocation6 + $0x23]]
    %s152 = sld [smem:[#allocation6 + $0x24]]
    %s153 = sld [smem:[#allocation6 + $0x25]]
    %s154 = sld [smem:[#allocation6 + $0x26]]
    %s155 = sld [smem:[#allocation6 + $0x27]]
    %s156 = sld [smem:[#allocation6 + $0x28]]
    %s157 = sld [smem:[#allocation6 + $0x29]]
    %s158 = sld [smem:[#allocation6 + $0x2a]]
    %s159 = sld [smem:[#allocation6 + $0x2b]]
    %s160 = sld [smem:[#allocation6 + $0x2c]]
    %s161 = sld [smem:[#allocation6 + $0x2d]]
    %s162 = sld [smem:[#allocation6 + $0x2e]]
    %s163 = sld [smem:[#allocation6 + $0x2f]]
    %s164 = sld [smem:[#allocation6 + $0x30]]
    %s165 = sld [smem:[#allocation6 + $0x31]]
    %s166 = sld [smem:[#allocation6 + $0x32]]
    %s167 = sld [smem:[#allocation6 + $0x33]]
    %s168 = sld [smem:[#allocation6 + $0x34]]
    %s169 = sld [smem:[#allocation6 + $0x35]]
    %s170 = sld [smem:[#allocation6 + $0x36]]
    %s171 = sld [smem:[#allocation6 + $0x37]]
    %s172 = sld [smem:[#allocation6 + $0x38]]
    %s173 = sld [smem:[#allocation6 + $0x39]]
    %s174 = sld [smem:[#allocation6 + $0x3a]]
    %s175 = sld [smem:[#allocation6 + $0x3b]]
    %s176 = sld [smem:[#allocation6 + $0x3c]]
    %s177 = sld [smem:[#allocation6 + $0x3d]]
    %s178 = sld [smem:[#allocation6 + $0x3e]]
    %s179 = sld [smem:[#allocation6 + $0x3f]]
    %s180 = sld [smem:[#allocation7]]
    %s181 = sld [smem:[#allocation7 + $0x1]]
    %s182 = sld [smem:[#allocation7 + $0x2]]
    %s183 = sld [smem:[#allocation7 + $0x3]]
    %v184 = vld [vmem:[%s4] sm:$0x7]
    %s185 = sadd.s32 0, 4
    %s186 = scalar_lea.vmem %s4, %s185
    %v187 = vld [vmem:[%s186] sm:$0x7]
    %v188 = vstv %s68
    %v189 = vmul.f32 %v188, %v184
    %v190 = vstv %s84
    %v191 = vmul.f32 %v190, %v187
    %v192 = vadd.f32 %v189, %v191
    %v193 = vstv %s100
    %v194 = vadd.f32 %v192, %v193
    %v195 = vmax.f32 %v194, 0.0
    %v196 = vstv %s116
    %v197 = vmul.f32 %v196, %v195
    %v198 = vstv %s180
    %v199 = vadd.f32 %v197, %v198
    %v200 = vstv %s117
    %v201 = vmul.f32 %v200, %v195
    %v202 = vstv %s181
    %v203 = vadd.f32 %v201, %v202
    %v204 = vstv %s118
    %v205 = vmul.f32 %v204, %v195
    %v206 = vstv %s182
    %v207 = vadd.f32 %v205, %v206
    %v208 = vstv %s119
    %v209 = vmul.f32 %v208, %v195
    %v210 = vstv %s183
    %v211 = vadd.f32 %v209, %v210
    %v212 = vstv %s69
    %v213 = vmul.f32 %v212, %v184
    %v214 = vstv %s85
    %v215 = vmul.f32 %v214, %v187
    %v216 = vadd.f32 %v213, %v215
    %v217 = vstv %s101
    %v218 = vadd.f32 %v216, %v217
    %v219 = vmax.f32 %v218, 0.0
    %v220 = vstv %s120
    %v221 = vmul.f32 %v220, %v219
    %v222 = vadd.f32 %v199, %v221
    %v223 = vstv %s121
    %v224 = vmul.f32 %v223, %v219
    %v225 = vadd.f32 %v203, %v224
    %v226 = vstv %s122
    %v227 = vmul.f32 %v226, %v219
    %v228 = vadd.f32 %v207, %v227
    %v229 = vstv %s123
    %v230 = vmul.f32 %v229, %v219
    %v231 = vadd.f32 %v211, %v230
    %v232 = vstv %s70
    %v233 = vmul.f32 %v232, %v184
    %v234 = vstv %s86
    %v235 = vmul.f32 %v234, %v187
    %v236 = vadd.f32 %v233, %v235
    %v237 = vstv %s102
    %v238 = vadd.f32 %v236, %v237
    %v239 = vmax.f32 %v238, 0.0
    %v240 = vstv %s124
    %v241 = vmul.f32 %v240, %v239
    %v242 = vadd.f32 %v222, %v241
    %v243 = vstv %s125
    %v244 = vmul.f32 %v243, %v239
    %v245 = vadd.f32 %v225, %v244
    %v246 = vstv %s126
    %v247 = vmul.f32 %v246, %v239
    %v248 = vadd.f32 %v228, %v247
    %v249 = vstv %s127
    %v250 = vmul.f32 %v249, %v239
    %v251 = vadd.f32 %v231, %v250
    %v252 = vstv %s71
    %v253 = vmul.f32 %v252, %v184
    %v254 = vstv %s87
    %v255 = vmul.f32 %v254, %v187
    %v256 = vadd.f32 %v253, %v255
    %v257 = vstv %s103
    %v258 = vadd.f32 %v256, %v257
    %v259 = vmax.f32 %v258, 0.0
    %v260 = vstv %s128
    %v261 = vmul.f32 %v260, %v259
    %v262 = vadd.f32 %v242, %v261
    %v263 = vstv %s129
    %v264 = vmul.f32 %v263, %v259
    %v265 = vadd.f32 %v245, %v264
    %v266 = vstv %s130
    %v267 = vmul.f32 %v266, %v259
    %v268 = vadd.f32 %v248, %v267
    %v269 = vstv %s131
    %v270 = vmul.f32 %v269, %v259
    %v271 = vadd.f32 %v251, %v270
    %v272 = vstv %s72
    %v273 = vmul.f32 %v272, %v184
    %v274 = vstv %s88
    %v275 = vmul.f32 %v274, %v187
    %v276 = vadd.f32 %v273, %v275
    %v277 = vstv %s104
    %v278 = vadd.f32 %v276, %v277
    %v279 = vmax.f32 %v278, 0.0
    %v280 = vstv %s132
    %v281 = vmul.f32 %v280, %v279
    %v282 = vadd.f32 %v262, %v281
    %v283 = vstv %s133
    %v284 = vmul.f32 %v283, %v279
    %v285 = vadd.f32 %v265, %v284
    %v286 = vstv %s134
    %v287 = vmul.f32 %v286, %v279
    %v288 = vadd.f32 %v268, %v287
    %v289 = vstv %s135
    %v290 = vmul.f32 %v289, %v279
    %v291 = vadd.f32 %v271, %v290
    %v292 = vstv %s73
    %v293 = vmul.f32 %v292, %v184
    %v294 = vstv %s89
    %v295 = vmul.f32 %v294, %v187
    %v296 = vadd.f32 %v293, %v295
    %v297 = vstv %s105
    %v298 = vadd.f32 %v296, %v297
    %v299 = vmax.f32 %v298, 0.0
    %v300 = vstv %s136
    %v301 = vmul.f32 %v300, %v299
    %v302 = vadd.f32 %v282, %v301
    %v303 = vstv %s137
    %v304 = vmul.f32 %v303, %v299
    %v305 = vadd.f32 %v285, %v304
    %v306 = vstv %s138
    %v307 = vmul.f32 %v306, %v299
    %v308 = vadd.f32 %v288, %v307
    %v309 = vstv %s139
    %v310 = vmul.f32 %v309, %v299
    %v311 = vadd.f32 %v291, %v310
    %v312 = vstv %s74
    %v313 = vmul.f32 %v312, %v184
    %v314 = vstv %s90
    %v315 = vmul.f32 %v314, %v187
    %v316 = vadd.f32 %v313, %v315
    %v317 = vstv %s106
    %v318 = vadd.f32 %v316, %v317
    %v319 = vmax.f32 %v318, 0.0
    %v320 = vstv %s140
    %v321 = vmul.f32 %v320, %v319
    %v322 = vadd.f32 %v302, %v321
    %v323 = vstv %s141
    %v324 = vmul.f32 %v323, %v319
    %v325 = vadd.f32 %v305, %v324
    %v326 = vstv %s142
    %v327 = vmul.f32 %v326, %v319
    %v328 = vadd.f32 %v308, %v327
    %v329 = vstv %s143
    %v330 = vmul.f32 %v329, %v319
    %v331 = vadd.f32 %v311, %v330
    %v332 = vstv %s75
    %v333 = vmul.f32 %v332, %v184
    %v334 = vstv %s91
    %v335 = vmul.f32 %v334, %v187
    %v336 = vadd.f32 %v333, %v335
    %v337 = vstv %s107
    %v338 = vadd.f32 %v336, %v337
    %v339 = vmax.f32 %v338, 0.0
    %v340 = vstv %s144
    %v341 = vmul.f32 %v340, %v339
    %v342 = vadd.f32 %v322, %v341
    %v343 = vstv %s145
    %v344 = vmul.f32 %v343, %v339
    %v345 = vadd.f32 %v325, %v344
    %v346 = vstv %s146
    %v347 = vmul.f32 %v346, %v339
    %v348 = vadd.f32 %v328, %v347
    %v349 = vstv %s147
    %v350 = vmul.f32 %v349, %v339
    %v351 = vadd.f32 %v331, %v350
    %v352 = vstv %s76
    %v353 = vmul.f32 %v352, %v184
    %v354 = vstv %s92
    %v355 = vmul.f32 %v354, %v187
    %v356 = vadd.f32 %v353, %v355
    %v357 = vstv %s108
    %v358 = vadd.f32 %v356, %v357
    %v359 = vmax.f32 %v358, 0.0
    %v360 = vstv %s148
    %v361 = vmul.f32 %v360, %v359
    %v362 = vadd.f32 %v342, %v361
    %v363 = vstv %s149
    %v364 = vmul.f32 %v363, %v359
    %v365 = vadd.f32 %v345, %v364
    %v366 = vstv %s150
    %v367 = vmul.f32 %v366, %v359
    %v368 = vadd.f32 %v348, %v367
    %v369 = vstv %s151
    %v370 = vmul.f32 %v369, %v359
    %v371 = vadd.f32 %v351, %v370
    %v372 = vstv %s77
    %v373 = vmul.f32 %v372, %v184
    %v374 = vstv %s93
    %v375 = vmul.f32 %v374, %v187
    %v376 = vadd.f32 %v373, %v375
    %v377 = vstv %s109
    %v378 = vadd.f32 %v376, %v377
    %v379 = vmax.f32 %v378, 0.0
    %v380 = vstv %s152
    %v381 = vmul.f32 %v380, %v379
    %v382 = vadd.f32 %v362, %v381
    %v383 = vstv %s153
    %v384 = vmul.f32 %v383, %v379
    %v385 = vadd.f32 %v365, %v384
    %v386 = vstv %s154
    %v387 = vmul.f32 %v386, %v379
    %v388 = vadd.f32 %v368, %v387
    %v389 = vstv %s155
    %v390 = vmul.f32 %v389, %v379
    %v391 = vadd.f32 %v371, %v390
    %v392 = vstv %s78
    %v393 = vmul.f32 %v392, %v184
    %v394 = vstv %s94
    %v395 = vmul.f32 %v394, %v187
    %v396 = vadd.f32 %v393, %v395
    %v397 = vstv %s110
    %v398 = vadd.f32 %v396, %v397
    %v399 = vmax.f32 %v398, 0.0
    %v400 = vstv %s156
    %v401 = vmul.f32 %v400, %v399
    %v402 = vadd.f32 %v382, %v401
    %v403 = vstv %s157
    %v404 = vmul.f32 %v403, %v399
    %v405 = vadd.f32 %v385, %v404
    %v406 = vstv %s158
    %v407 = vmul.f32 %v406, %v399
    %v408 = vadd.f32 %v388, %v407
    %v409 = vstv %s159
    %v410 = vmul.f32 %v409, %v399
    %v411 = vadd.f32 %v391, %v410
    %v412 = vstv %s79
    %v413 = vmul.f32 %v412, %v184
    %v414 = vstv %s95
    %v415 = vmul.f32 %v414, %v187
    %v416 = vadd.f32 %v413, %v415
    %v417 = vstv %s111
    %v418 = vadd.f32 %v416, %v417
    %v419 = vmax.f32 %v418, 0.0
    %v420 = vstv %s160
    %v421 = vmul.f32 %v420, %v419
    %v422 = vadd.f32 %v402, %v421
    %v423 = vstv %s161
    %v424 = vmul.f32 %v423, %v419
    %v425 = vadd.f32 %v405, %v424
    %v426 = vstv %s162
    %v427 = vmul.f32 %v426, %v419
    %v428 = vadd.f32 %v408, %v427
    %v429 = vstv %s163
    %v430 = vmul.f32 %v429, %v419
    %v431 = vadd.f32 %v411, %v430
    %v432 = vstv %s80
    %v433 = vmul.f32 %v432, %v184
    %v434 = vstv %s96
    %v435 = vmul.f32 %v434, %v187
    %v436 = vadd.f32 %v433, %v435
    %v437 = vstv %s112
    %v438 = vadd.f32 %v436, %v437
    %v439 = vmax.f32 %v438, 0.0
    %v440 = vstv %s164
    %v441 = vmul.f32 %v440, %v439
    %v442 = vadd.f32 %v422, %v441
    %v443 = vstv %s165
    %v444 = vmul.f32 %v443, %v439
    %v445 = vadd.f32 %v425, %v444
    %v446 = vstv %s166
    %v447 = vmul.f32 %v446, %v439
    %v448 = vadd.f32 %v428, %v447
    %v449 = vstv %s167
    %v450 = vmul.f32 %v449, %v439
    %v451 = vadd.f32 %v431, %v450
    %v452 = vstv %s81
    %v453 = vmul.f32 %v452, %v184
    %v454 = vstv %s97
    %v455 = vmul.f32 %v454, %v187
    %v456 = vadd.f32 %v453, %v455
    %v457 = vstv %s113
    %v458 = vadd.f32 %v456, %v457
    %v459 = vmax.f32 %v458, 0.0
    %v460 = vstv %s168
    %v461 = vmul.f32 %v460, %v459
    %v462 = vadd.f32 %v442, %v461
    %v463 = vstv %s169
    %v464 = vmul.f32 %v463, %v459
    %v465 = vadd.f32 %v445, %v464
    %v466 = vstv %s170
    %v467 = vmul.f32 %v466, %v459
    %v468 = vadd.f32 %v448, %v467
    %v469 = vstv %s171
    %v470 = vmul.f32 %v469, %v459
    %v471 = vadd.f32 %v451, %v470
    %v472 = vstv %s82
    %v473 = vmul.f32 %v472, %v184
    %v474 = vstv %s98
    %v475 = vmul.f32 %v474, %v187
    %v476 = vadd.f32 %v473, %v475
    %v477 = vstv %s114
    %v478 = vadd.f32 %v476, %v477
    %v479 = vmax.f32 %v478, 0.0
    %v480 = vstv %s172
    %v481 = vmul.f32 %v480, %v479
    %v482 = vadd.f32 %v462, %v481
    %v483 = vstv %s173
    %v484 = vmul.f32 %v483, %v479
    %v485 = vadd.f32 %v465, %v484
    %v486 = vstv %s174
    %v487 = vmul.f32 %v486, %v479
    %v488 = vadd.f32 %v468, %v487
    %v489 = vstv %s175
    %v490 = vmul.f32 %v489, %v479
    %v491 = vadd.f32 %v471, %v490
    %v492 = vstv %s83
    %v493 = vmul.f32 %v492, %v184
    %v494 = vstv %s99
    %v495 = vmul.f32 %v494, %v187
    %v496 = vadd.f32 %v493, %v495
    %v497 = vstv %s115
    %v498 = vadd.f32 %v496, %v497
    %v499 = vmax.f32 %v498, 0.0
    %v500 = vstv %s176
    %v501 = vmul.f32 %v500, %v499
    %v502 = vadd.f32 %v482, %v501
    %v503 = vstv %s177
    %v504 = vmul.f32 %v503, %v499
    %v505 = vadd.f32 %v485, %v504
    %v506 = vstv %s178
    %v507 = vmul.f32 %v506, %v499
    %v508 = vadd.f32 %v488, %v507
    %v509 = vstv %s179
    %v510 = vmul.f32 %v509, %v499
    %v511 = vadd.f32 %v491, %v510
    %512 = vst [vmem:[%s5] sm:$0x7] %v502
    %s513 = scalar_lea.vmem %s5, %s185
    %514 = vst [vmem:[%s513] sm:$0x7] %v505
    %s515 = sadd.s32 0, 8
    %s516 = scalar_lea.vmem %s5, %s515
    %517 = vst [vmem:[%s516] sm:$0x7] %v508
    %s518 = sadd.s32 0, 12
    %s519 = scalar_lea.vmem %s5, %s518
    %520 = vst [vmem:[%s519] sm:$0x7] %v511
    // Predicated region
    $region38: #{dot_controller_forward_pallas.1} parent=1 // pred_check
      _
    $region39: #{dot_controller_forward_pallas.1} parent=1 // pred_check_branch
      %522 = sbr.rel (0) target = $region41
    $region40: #{dot_controller_forward_pallas.1} parent=1 // pred_region
      _
    $region41: #{dot_controller_forward_pallas.1} parent=1 // pred_fallthru
      _
    // Predicated region
    $region42: #{dot_controller_forward_pallas.1} parent=1 // pred_check
      _
    $region43: #{dot_controller_forward_pallas.1} parent=1 // pred_check_branch
      %524 = sbr.rel (0) target = $region45
    $region44: #{dot_controller_forward_pallas.1} parent=1 // pred_region
      _
    $region45: #{dot_controller_forward_pallas.1} parent=1 // pred_fallthru
      _
    %525 = vsyncpa [#allocation3], 1
    %526 = vsyncpa [#allocation5], 1
    %527 = vsyncpa [#allocation8], 1

</llo_original>
